<compile_context>
chip_gen: v7x
topology: tpu7x:2x2x1
jax: 0.10.0
libtpu: 0.0.40
codegen_flags: <defaults>
</compile_context>

<pallas_src>
import jax
import jax.numpy as jnp
from jax.experimental import pallas as pl
from jax.experimental.pallas import tpu as pltpu


def _mul_add_kernel(x_ref, o_ref):
    # Single fused elementwise expression, one full-tile store.
    # Python int literals stay weakly typed -> no unwanted promotion for
    # integer inputs; explicit cast keeps the store dtype-exact.
    o_ref[...] = (x_ref[...] * 2 + 3).astype(o_ref.dtype)


def _target_tile_bytes():
    """Per-generation streaming tile size (per buffer)."""
    try:
        kind = jax.devices()[0].device_kind.lower()
    except Exception:
        kind = ""
    if "v7" in kind or "7x" in kind:
        return 4 << 20   # 4 bufs * 4 MiB = 16 MiB < 32 MiB scoped default
    if "v6" in kind:
        return 2 << 20   # 8 MiB buffered, lots of headroom
    return 1 << 20       # v5e / unknown: stay well under 16 MiB default


def _full_block_vmem_bytes(shape, itemsize, sub):
    """Conservative VMEM footprint of the whole array as a single block."""
    if len(shape) == 0:
        return itemsize
    dims = tuple(shape) if len(shape) >= 2 else (1,) + tuple(shape)
    lead = 1
    for d in dims[:-2]:
        lead *= d
    m = -(-dims[-2] // sub) * sub        # pad second-minor to sublane multiple
    n = -(-dims[-1] // 128) * 128        # pad minor to lane multiple
    return lead * m * n * itemsize


_SMALL_LIMIT = 2 << 20  # per-buffer; in + out ~= 4 MiB, safe on every chip


def pt_module_forward(x):
    """Equivalent of: torch.stack([x[i] * 2 + 3 for i in range(x.shape[0])])."""
    orig_shape = x.shape
    dtype = x.dtype
    itemsize = jnp.dtype(dtype).itemsize
    total = x.size

    # dtype-aware sublane multiple so packed (bf16/int8) blocks stay
    # whole-vreg and every store is full-width.
    sub = {4: 8, 2: 16, 1: 32}.get(itemsize, 8)

    # ---------- small-input fast path: one full-array block, no grid ----------
    if x.ndim >= 1 and _full_block_vmem_bytes(orig_shape, itemsize, sub) <= _SMALL_LIMIT:
        return pl.pallas_call(
            _mul_add_kernel,
            out_shape=jax.ShapeDtypeStruct(orig_shape, dtype),
        )(x)

    # ---------- streaming path: lane-dense 2D view, tiled 1D grid ----------
    TN_MAX = 512
    tn = 0
    for k in range(TN_MAX // 128, 0, -1):   # largest lane-multiple divisor
        if total % (128 * k) == 0:
            tn = 128 * k
            break

    flat = x.reshape(-1)
    if tn and (total // tn) % sub == 0:
        # Clean factorization: no pad, no trailing slice (no extra HBM trips).
        rows = total // tn
        padded = False
    else:
        tn = TN_MAX
        rows = pl.cdiv(total, tn)
        rows = pl.cdiv(rows, sub) * sub
        flat = jnp.pad(flat, (0, rows * tn - total))
        padded = True

    x2d = flat.reshape(rows, tn)

    # Tile height: aim for the per-chip tile size, multiple of `sub`, and
    # split into >= 2 grid steps so both v7x TensorCores get work.
    tile_bytes = _target_tile_bytes()
    tm = max(sub, (tile_bytes // (tn * itemsize)) // sub * sub)
    half_rows = pl.cdiv(pl.cdiv(rows, 2), sub) * sub
    tm = min(tm, half_rows)
    grid = (pl.cdiv(rows, tm),)

    out2d = pl.pallas_call(
        _mul_add_kernel,
        out_shape=jax.ShapeDtypeStruct((rows, tn), dtype),
        grid_spec=pl.GridSpec(
            grid=grid,
            in_specs=[pl.BlockSpec((tm, tn), lambda i: (i, 0))],
            out_specs=pl.BlockSpec((tm, tn), lambda i: (i, 0)),
        ),
        compiler_params=pltpu.CompilerParams(
            dimension_semantics=("parallel",),
        ),
    )(x2d)

    out = out2d
    if padded:
        out = out.reshape(-1)[:total]
    return out.reshape(orig_shape)


if __name__ == "__main__":
    key = jax.random.PRNGKey(0)

    # Small shape from the module spec: exercises the full-array fast path.
    x_small = jax.random.normal(key, (2, 4, 16, 16), dtype=jnp.float32)
    out_small = jax.block_until_ready(pt_module_forward(x_small))
    ref_small = x_small * 2.0 + 3.0
    assert out_small.shape == ref_small.shape
    assert jnp.allclose(out_small, ref_small, atol=1e-6), "small-path mismatch"

    # Medium shape: exercises the tiled streaming path (no pad, grid >= 2).
    x_big = jax.random.normal(key, (8, 32, 64, 64), dtype=jnp.float32)
    out_big = jax.block_until_ready(pt_module_forward(x_big))
    ref_big = x_big * 2.0 + 3.0
    assert out_big.shape == ref_big.shape
    assert jnp.allclose(out_big, ref_big, atol=1e-6), "stream-path mismatch"

    print("KERNEL_OK")
</pallas_src>

<mosaic_0001>
module attributes {stable_mosaic.version = 11 : i64} {
  func.func @_mul_add_kernel(%arg0: memref<2x4x16x16xf32, #tpu.memory_space<vmem>>, %arg1: memref<2x4x16x16xf32, #tpu.memory_space<vmem>>) attributes {dimension_semantics = [], scalar_prefetch = 0 : i64, scratch_operands = 0 : i64, tpu.core_type = #tpu.core_type<tc>} {
    %c0 = arith.constant 0 : index
    %c0_0 = arith.constant 0 : index
    %c0_1 = arith.constant 0 : index
    %c0_2 = arith.constant 0 : index
    %0 = vector.load %arg0[%c0, %c0_0, %c0_1, %c0_2] : memref<2x4x16x16xf32, #tpu.memory_space<vmem>>, vector<2x4x16x16xf32>
    %cst = arith.constant 2.000000e+00 : f32
    %1 = vector.broadcast %cst : f32 to vector<2x4x16x16xf32>
    %2 = arith.mulf %0, %1 : vector<2x4x16x16xf32>
    %cst_3 = arith.constant 3.000000e+00 : f32
    %3 = vector.broadcast %cst_3 : f32 to vector<2x4x16x16xf32>
    %4 = arith.addf %2, %3 : vector<2x4x16x16xf32>
    %c0_4 = arith.constant 0 : index
    %c0_5 = arith.constant 0 : index
    %c0_6 = arith.constant 0 : index
    %c0_7 = arith.constant 0 : index
    %5 = vector.load %arg1[%c0_4, %c0_5, %c0_6, %c0_7] : memref<2x4x16x16xf32, #tpu.memory_space<vmem>>, vector<2x4x16x16xf32>
    tpu.vector_store %arg1[%c0_4, %c0_5, %c0_6, %c0_7], %4 {strides = array<i32>} : memref<2x4x16x16xf32, #tpu.memory_space<vmem>>, vector<2x4x16x16xf32>,
    return
  }
}

</mosaic_0001>

<llo_original>
// kernel: tpu_custom_call.1
$region0: #{tpu_custom_call.1}
  #allocation0 [shape = 'u32[]', space=smem, size = 0x4, offset = 0x4, fixed_abs, tag = 'smem constant byte address 0x4 - core index']
  #allocation1 [shape = 'u32[144,128]{1,0:T(1,128)}', space=vmem, size = 0x12000, scoped, tag = 'internal scratch']
  %s0 = inlined_call_operand.hbm [shape: f32[2,4,16,16], index: 0, kind: input, shape index: {}]
  %s1 = inlined_call_operand.hbm [shape: f32[2,4,16,16], index: 1, kind: output, shape index: {}]
  %s2 = sld [smem:[#allocation0]]
  $region18: #{tpu_custom_call.1} parent=0
    _
  %s4 = ssub.s32 1, %s2
  %s5 = scalar_select 0, %s4, %s2
  $region1: #{tpu_custom_call.1} parent=0
    #allocation2 [shape = 'u8[65536]{0}', space=vmem, size = 0x10000, scoped, tag = 'input window, operand 0, single buffered']
    #allocation3 [shape = 's32[1]{0}', space=sflag, size = 0x4, scoped, tag = 'scoped memory for tpu_custom_call.1']
    #allocation4 [shape = 's32[1]{0}', space=sflag, size = 0x4, scoped, tag = 'scoped memory for tpu_custom_call.1']
    #allocation5 [shape = 'u8[65536]{0}', space=vmem, size = 0x10000, scoped, tag = 'output window, operand 0, single buffered']
    %6 = vsyncpa [#allocation3], 0
    %7 = vsyncpa [#allocation4], 0
    // Predicated region
    $region2: #{tpu_custom_call.1} parent=1 // pred_check
      _
    $region3: #{tpu_custom_call.1} parent=1 // pred_check_branch
      %9 = sbr.rel (0) target = $region5
    $region4: #{tpu_custom_call.1} parent=1 // pred_region
      %s11 = ssub.s32 2048, 2048
      %12 = vsyncadd [#allocation3], %s11
      %s13 = sshll.u32 [#allocation2], 4
      %s14 = int_to_ptr.vmem [resolvable:$true] %s13
      %19 = dma.hbm_to_vmem [thread:$0]  %s0, 2048, %s14, [#allocation3], 128, 128, 8
    $region5: #{tpu_custom_call.1} parent=1 // pred_fallthru
      _
    // Predicated region
    $region6: #{tpu_custom_call.1} parent=1 // pred_check
      _
    $region7: #{tpu_custom_call.1} parent=1 // pred_check_branch
      %21 = sbr.rel (0) target = $region9
    $region8: #{tpu_custom_call.1} parent=1 // pred_region
      %22 = dma.done [#allocation3], 2048
    $region9: #{tpu_custom_call.1} parent=1 // pred_fallthru
      _
    %v23 = vld [vmem:[#allocation2] sm:$0xff]
    %v24 = vld [vmem:[#allocation2 + $0x8] sm:$0xff]
    %v25 = vld [vmem:[#allocation2 + $0x10] sm:$0xff]
    %v26 = vld [vmem:[#allocation2 + $0x18] sm:$0xff]
    %v27 = vld [vmem:[#allocation2 + $0x20] sm:$0xff]
    %v28 = vld [vmem:[#allocation2 + $0x28] sm:$0xff]
    %v29 = vld [vmem:[#allocation2 + $0x30] sm:$0xff]
    %v30 = vld [vmem:[#allocation2 + $0x38] sm:$0xff]
    %v31 = vld [vmem:[#allocation2 + $0x40] sm:$0xff]
    %v32 = vld [vmem:[#allocation2 + $0x48] sm:$0xff]
    %v33 = vld [vmem:[#allocation2 + $0x50] sm:$0xff]
    %v34 = vld [vmem:[#allocation2 + $0x58] sm:$0xff]
    %v35 = vld [vmem:[#allocation2 + $0x60] sm:$0xff]
    %v36 = vld [vmem:[#allocation2 + $0x68] sm:$0xff]
    %v37 = vld [vmem:[#allocation2 + $0x70] sm:$0xff]
    %v38 = vld [vmem:[#allocation2 + $0x78] sm:$0xff]
    %v39 = vmul.f32 %v23, 2.0
    %v40 = vmul.f32 %v24, 2.0
    %v41 = vmul.f32 %v25, 2.0
    %v42 = vmul.f32 %v26, 2.0
    %v43 = vmul.f32 %v27, 2.0
    %v44 = vmul.f32 %v28, 2.0
    %v45 = vmul.f32 %v29, 2.0
    %v46 = vmul.f32 %v30, 2.0
    %v47 = vmul.f32 %v31, 2.0
    %v48 = vmul.f32 %v32, 2.0
    %v49 = vmul.f32 %v33, 2.0
    %v50 = vmul.f32 %v34, 2.0
    %v51 = vmul.f32 %v35, 2.0
    %v52 = vmul.f32 %v36, 2.0
    %v53 = vmul.f32 %v37, 2.0
    %v54 = vmul.f32 %v38, 2.0
    %v55 = vadd.f32 %v39, 3.0
    %v56 = vadd.f32 %v40, 3.0
    %v57 = vadd.f32 %v41, 3.0
    %v58 = vadd.f32 %v42, 3.0
    %v59 = vadd.f32 %v43, 3.0
    %v60 = vadd.f32 %v44, 3.0
    %v61 = vadd.f32 %v45, 3.0
    %v62 = vadd.f32 %v46, 3.0
    %v63 = vadd.f32 %v47, 3.0
    %v64 = vadd.f32 %v48, 3.0
    %v65 = vadd.f32 %v49, 3.0
    %v66 = vadd.f32 %v50, 3.0
    %v67 = vadd.f32 %v51, 3.0
    %v68 = vadd.f32 %v52, 3.0
    %v69 = vadd.f32 %v53, 3.0
    %v70 = vadd.f32 %v54, 3.0
    %vm71 = vcmask 130048
    %72 = vst.msk [vmem:[#allocation5] sm:$0xff] %vm71, %v55
    %73 = vst.msk [vmem:[#allocation5 + $0x8] sm:$0xff] %vm71, %v56
    %74 = vst.msk [vmem:[#allocation5 + $0x10] sm:$0xff] %vm71, %v57
    %75 = vst.msk [vmem:[#allocation5 + $0x18] sm:$0xff] %vm71, %v58
    %76 = vst.msk [vmem:[#allocation5 + $0x20] sm:$0xff] %vm71, %v59
    %77 = vst.msk [vmem:[#allocation5 + $0x28] sm:$0xff] %vm71, %v60
    %78 = vst.msk [vmem:[#allocation5 + $0x30] sm:$0xff] %vm71, %v61
    %79 = vst.msk [vmem:[#allocation5 + $0x38] sm:$0xff] %vm71, %v62
    %80 = vst.msk [vmem:[#allocation5 + $0x40] sm:$0xff] %vm71, %v63
    %81 = vst.msk [vmem:[#allocation5 + $0x48] sm:$0xff] %vm71, %v64
    %82 = vst.msk [vmem:[#allocation5 + $0x50] sm:$0xff] %vm71, %v65
    %83 = vst.msk [vmem:[#allocation5 + $0x58] sm:$0xff] %vm71, %v66
    %84 = vst.msk [vmem:[#allocation5 + $0x60] sm:$0xff] %vm71, %v67
    %85 = vst.msk [vmem:[#allocation5 + $0x68] sm:$0xff] %vm71, %v68
    %86 = vst.msk [vmem:[#allocation5 + $0x70] sm:$0xff] %vm71, %v69
    %87 = vst.msk [vmem:[#allocation5 + $0x78] sm:$0xff] %vm71, %v70
    // Predicated region
    $region10: #{tpu_custom_call.1} parent=1 // pred_check
      _
    $region11: #{tpu_custom_call.1} parent=1 // pred_check_branch
      %89 = sbr.rel (0) target = $region13
    $region12: #{tpu_custom_call.1} parent=1 // pred_region
      %s91 = ssub.s32 2048, 2048
      %92 = vsyncadd [#allocation4], %s91
      %s93 = sshll.u32 [#allocation5], 4
      %s94 = int_to_ptr.vmem [resolvable:$true] %s93
      %99 = dma.vmem_to_hbm [thread:$0]  %s94, 2048, %s1, [#allocation4], 128, 128, 8
    $region13: #{tpu_custom_call.1} parent=1 // pred_fallthru
      _
    // Predicated region
    $region14: #{tpu_custom_call.1} parent=1 // pred_check
      _
    $region15: #{tpu_custom_call.1} parent=1 // pred_check_branch
      %101 = sbr.rel (0) target = $region17
    $region16: #{tpu_custom_call.1} parent=1 // pred_region
      %102 = dma.done [#allocation4], 2048
    $region17: #{tpu_custom_call.1} parent=1 // pred_fallthru
      _
    %103 = vsyncpa [#allocation3], 1
    %104 = vsyncpa [#allocation4], 1

</llo_original>
